<compile_context>
chip_gen: v7x
topology: tpu7x:2x2x1
jax: 0.10.0
libtpu: 0.0.40
codegen_flags: <defaults>
</compile_context>

<pallas_src>
import math

import jax
import jax.numpy as jnp
from jax.experimental import pallas as pl
from jax.experimental.pallas import tpu as pltpu

_LANE = 128
_DEFAULT_TILE_M = 8192            # packed rows per grid step (~26 MiB VMEM dbl-buffered)
_DEFAULT_VMEM_CAP = 48 << 20      # per-step scratch budget; safe on v5e/v6e/v7x
# Below this many rows a fused XLA relu(x @ W.T + b) beats any pallas_call
# (launch + per-step overhead dwarf the few KiB of HBM traffic).
_DEFAULT_MIN_PALLAS_ROWS = 4096


def _embed_kernel(x_ref, w_ref, b_ref, o_ref):
    # x_ref: (TM, Kp)   w_ref: (Kp, Hp)   b_ref: (1, Hp)   o_ref: (TM, Hp)
    acc = jnp.dot(x_ref[...], w_ref[...], preferred_element_type=jnp.float32)
    acc = acc + b_ref[...]                                   # broadcast (1, Hp)
    o_ref[...] = jnp.maximum(acc, 0.0).astype(o_ref.dtype)   # ReLU


def _lane_dense_packs(hidden):
    """Packing factors p (largest preferred) with p*hidden a multiple of 128."""
    q = _LANE // math.gcd(hidden, _LANE)
    if q > 16:
        # Block-diagonal blow-up not worth it (keep pack < 32 in f32).
        return (1,) if hidden % _LANE == 0 else ()
    if q == 1:
        return (1,)           # hidden already lane-dense
    # Prefer 2*q (pack=8 for hidden=32 -> Hp=256): halves grid length, doubles
    # x lane utilisation; the extra block-diag FLOPs stay far below the MXU
    # roofline at HBM row rate.
    return (2 * q, q)


def _pack_params(weight, bias, pack):
    """(H, K) weight + (H,) bias -> block-diagonal (pack*K, pack*H) + (1, pack*H)."""
    w_t = weight.T                                     # (K, H)
    k, h = w_t.shape
    if pack == 1:
        return w_t, bias.reshape(1, h)
    eye = jnp.eye(pack, dtype=w_t.dtype)
    w_packed = jnp.einsum("pq,kh->pkqh", eye, w_t).reshape(pack * k, pack * h)
    b_packed = jnp.tile(bias, pack).reshape(1, pack * h)
    return w_packed, b_packed


def _pallas_embed_packed(x_packed, w_packed, b_packed, *, tile_m, vmem_cap):
    """relu(x_packed @ w_packed + b_packed), tiled over packed rows."""
    mp, kp = x_packed.shape
    hp = w_packed.shape[1]
    itemsize = x_packed.dtype.itemsize

    # Per-step VMEM: x and out blocks are lane-padded to multiples of 128 lanes
    # and double-buffered by the Pallas pipeline.
    def step_bytes(tm):
        kp_pad = pl.cdiv(kp, _LANE) * _LANE
        hp_pad = pl.cdiv(hp, _LANE) * _LANE
        return 2 * tm * (kp_pad + hp_pad) * itemsize

    tm = min(tile_m, mp)
    while tm > 512 and step_bytes(tm) > vmem_cap:
        tm //= 2
    if tm < mp:
        tm = max((tm // 8) * 8, 8)        # keep the (8,128) tiling rule happy
    else:
        tm = mp                           # full extent: any size is legal
    grid = (pl.cdiv(mp, tm),)

    # Explicit scoped-VMEM limit (v5e default is only 16 MiB; physical VMEM is
    # 128 MiB on v5e/v6e and 64 MiB on v7x, so this stays well within bounds).
    vmem_limit = int(max(step_bytes(tm) + (2 << 20), 32 << 20))

    cost = pl.CostEstimate(
        flops=2 * mp * kp * hp,           # pack-inflated block-diag FLOPs (as executed)
        transcendentals=0,
        bytes_accessed=itemsize * (mp * kp + kp * hp + hp + mp * hp),
    )

    # NOTE: when the final grid block is ragged (mp % tm != 0) the x read is a
    # clamped partial block (garbage rows), but rows are independent and the
    # out-of-bounds output rows are never written back, so this is benign.
    # Do not introduce any cross-row reduction in this kernel.
    return pl.pallas_call(
        _embed_kernel,
        out_shape=jax.ShapeDtypeStruct((mp, hp), x_packed.dtype),
        grid_spec=pl.GridSpec(
            grid=grid,
            in_specs=[
                pl.BlockSpec((tm, kp), lambda m: (m, 0)),   # x rows: pipelined
                pl.BlockSpec((kp, hp), lambda m: (0, 0)),   # weight: VMEM-resident
                pl.BlockSpec((1, hp), lambda m: (0, 0)),    # bias: VMEM-resident
            ],
            out_specs=pl.BlockSpec((tm, hp), lambda m: (m, 0)),
        ),
        compiler_params=pltpu.CompilerParams(
            # "parallel" -> megacore sharding on v7x, neutral on v5e/v6e.
            # TODO(synk): verify both v7x TensorCores are active in a trace; if
            # not, add a leading CORE_PARALLEL grid axis of size 2.
            dimension_semantics=("parallel",),
            vmem_limit_bytes=vmem_limit,
        ),
        cost_estimate=cost,
    )(x_packed, w_packed, b_packed)


def make_ethucy_feature_extractor(weight, bias, *,
                                  tile_m=_DEFAULT_TILE_M,
                                  vmem_cap_bytes=_DEFAULT_VMEM_CAP,
                                  min_pallas_rows=_DEFAULT_MIN_PALLAS_ROWS,
                                  jit=True):
    """Build forward(x) = relu(x @ weight.T + bias) over the last dim of x.

    The block-diagonal packed weight/bias are precomputed once here (hoisted
    out of the per-call path) and captured as constants by the jitted forward.
    """
    hidden, in_dim = weight.shape
    packs = _lane_dense_packs(hidden)
    packed = {p: _pack_params(weight, bias, p) for p in packs}

    w_t_hi = weight.T  # for the small-M / tail XLA path

    def xla_path(x2d):
        y = jnp.dot(x2d, w_t_hi, precision=jax.lax.Precision.HIGHEST) + bias
        return jnp.maximum(y, 0.0)

    def forward(x):
        lead = x.shape[:-1]
        assert x.shape[-1] == in_dim, "last dim must equal input_dim"
        m = math.prod(lead) if lead else 1
        x2d = x.reshape(m, in_dim)

        if m < min_pallas_rows or not packs:
            return xla_path(x2d).reshape(*lead, hidden)

        # Fast path: largest lane-dense pack that divides M exactly -> both the
        # input packing and the (Mp, Hp)->(M, H) unpacking are free reshapes.
        pack = next((p for p in packs if m % p == 0), None)
        if pack is not None:
            mp = m // pack
            out_packed = _pallas_embed_packed(
                x2d.reshape(mp, pack * in_dim), *packed[pack],
                tile_m=tile_m, vmem_cap=vmem_cap_bytes)
            out2d = out_packed.reshape(m, hidden)
        else:
            # Ragged M: kernel on the pack-aligned prefix, XLA on the tiny tail.
            pack = packs[0]
            m_floor = (m // pack) * pack
            if m_floor == 0:
                return xla_path(x2d).reshape(*lead, hidden)
            mp = m_floor // pack
            out_main = _pallas_embed_packed(
                x2d[:m_floor].reshape(mp, pack * in_dim), *packed[pack],
                tile_m=tile_m, vmem_cap=vmem_cap_bytes).reshape(m_floor, hidden)
            out_tail = xla_path(x2d[m_floor:])
            out2d = jnp.concatenate([out_main, out_tail], axis=0)

        return out2d.reshape(*lead, hidden)

    return jax.jit(forward) if jit else forward


def ethucy_feature_extractor(x, weight, bias, **kwargs):
    """One-shot convenience wrapper (prefer the factory for repeated calls)."""
    return make_ethucy_feature_extractor(weight, bias, jit=False, **kwargs)(x)


def _reference(x, weight, bias):
    y = jnp.einsum("...k,hk->...h", x, weight,
                   precision=jax.lax.Precision.HIGHEST) + bias
    return jnp.maximum(y, 0.0)


if __name__ == "__main__":
    # ETH/UCY box input: input_dim=6, hidden_size=32.
    B, T, INPUT_DIM, HIDDEN = 2, 8, 6, 32

    key = jax.random.PRNGKey(0)
    kx, kw, kb, kx2, kx3 = jax.random.split(key, 5)

    weight = jax.random.normal(kw, (HIDDEN, INPUT_DIM), dtype=jnp.float32) * 0.1
    bias = jax.random.normal(kb, (HIDDEN,), dtype=jnp.float32) * 0.1

    # Packed weights hoisted once; min_pallas_rows=0 forces the Pallas path at
    # demo sizes so the kernel is actually exercised.
    forward = make_ethucy_feature_extractor(weight, bias, min_pallas_rows=0)

    # 1) Small, pack-aligned shape (M=16): single-block grid.
    x1 = jax.random.normal(kx, (B, T, INPUT_DIM), dtype=jnp.float32)
    o1 = jax.block_until_ready(forward(x1))
    assert o1.shape == (B, T, HIDDEN)
    assert jnp.allclose(o1, _reference(x1, weight, bias), atol=1e-4, rtol=1e-4)

    # 2) Ragged M (M=4202, not divisible by 8 or 4): kernel prefix + XLA tail.
    x2 = jax.random.normal(kx2, (2, 2101, INPUT_DIM), dtype=jnp.float32)
    o2 = jax.block_until_ready(forward(x2))
    assert o2.shape == (2, 2101, HIDDEN)
    assert jnp.allclose(o2, _reference(x2, weight, bias), atol=1e-4, rtol=1e-4)

    # 3) Large, multi-block grid (M=131072 -> Mp=16384 -> two 8192-row steps).
    x3 = jax.random.normal(kx3, (16, 8192, INPUT_DIM), dtype=jnp.float32)
    o3 = jax.block_until_ready(forward(x3))
    assert o3.shape == (16, 8192, HIDDEN)
    assert jnp.allclose(o3, _reference(x3, weight, bias), atol=1e-4, rtol=1e-4)

    print("KERNEL_OK")
</pallas_src>

<mosaic_0001>
module attributes {stable_mosaic.version = 11 : i64} {
  func.func @_embed_kernel(%arg0: i32, %arg1: memref<2x48xf32, #tpu.memory_space<vmem>>, %arg2: memref<48x256xf32, #tpu.memory_space<vmem>>, %arg3: memref<1x256xf32, #tpu.memory_space<vmem>>, %arg4: memref<2x256xf32, #tpu.memory_space<vmem>>) attributes {dimension_semantics = [#tpu.dimension_semantics<parallel>], iteration_bounds = array<i64: 1>, scalar_prefetch = 0 : i64, scratch_operands = 0 : i64, tpu.core_type = #tpu.core_type<tc>, window_params = [{transform_indices = @transform_0, window_bounds = array<i64: 2, 48>}, {pipeline_mode = #tpu.pipeline_mode<synchronous>, transform_indices = @transform_1, window_bounds = array<i64: 48, 256>}, {pipeline_mode = #tpu.pipeline_mode<synchronous>, transform_indices = @transform_2, window_bounds = array<i64: 1, 256>}, {transform_indices = @transform_3, window_bounds = array<i64: 2, 256>}]} {
    %c0 = arith.constant 0 : index
    %c0_0 = arith.constant 0 : index
    %0 = vector.load %arg1[%c0, %c0_0] : memref<2x48xf32, #tpu.memory_space<vmem>>, vector<2x48xf32>
    %c0_1 = arith.constant 0 : index
    %c0_2 = arith.constant 0 : index
    %1 = vector.load %arg2[%c0_1, %c0_2] : memref<48x256xf32, #tpu.memory_space<vmem>>, vector<48x256xf32>
    %cst = arith.constant dense<0.000000e+00> : vector<2x256xf32>
    %2 = tpu.matmul %0, %1, %cst {dimension_numbers = #tpu.dot_dimension_numbers<[1], [0], [0], [1], [0, 0, 1, 1], [], []>} : vector<2x48xf32>, vector<48x256xf32>, vector<2x256xf32> -> vector<2x256xf32>
    %c0_3 = arith.constant 0 : index
    %c0_4 = arith.constant 0 : index
    %3 = vector.load %arg3[%c0_3, %c0_4] : memref<1x256xf32, #tpu.memory_space<vmem>>, vector<1x256xf32>
    %4 = vector.broadcast %3 : vector<1x256xf32> to vector<2x256xf32>
    %5 = arith.addf %2, %4 : vector<2x256xf32>
    %cst_5 = arith.constant 0.000000e+00 : f32
    %6 = vector.broadcast %cst_5 : f32 to vector<2x256xf32>
    %7 = arith.maximumf %5, %6 : vector<2x256xf32>
    %c0_6 = arith.constant 0 : index
    %c0_7 = arith.constant 0 : index
    %8 = vector.load %arg4[%c0_6, %c0_7] : memref<2x256xf32, #tpu.memory_space<vmem>>, vector<2x256xf32>
    tpu.vector_store %arg4[%c0_6, %c0_7], %7 {strides = array<i32>} : memref<2x256xf32, #tpu.memory_space<vmem>>, vector<2x256xf32>,
    return
  }
  func.func @transform_0(%arg0: i32) -> (i32, i32) {
    %c0_i32 = arith.constant 0 : i32
    %c0_i32_0 = arith.constant 0 : i32
    return %arg0, %c0_i32 : i32, i32
  }
  func.func @transform_1(%arg0: i32) -> (i32, i32) {
    %c0_i32 = arith.constant 0 : i32
    %c0_i32_0 = arith.constant 0 : i32
    %c0_i32_1 = arith.constant 0 : i32
    return %c0_i32, %c0_i32_0 : i32, i32
  }
  func.func @transform_2(%arg0: i32) -> (i32, i32) {
    %c0_i32 = arith.constant 0 : i32
    %c0_i32_0 = arith.constant 0 : i32
    %c0_i32_1 = arith.constant 0 : i32
    return %c0_i32, %c0_i32_0 : i32, i32
  }
  func.func @transform_3(%arg0: i32) -> (i32, i32) {
    %c0_i32 = arith.constant 0 : i32
    %c0_i32_0 = arith.constant 0 : i32
    return %arg0, %c0_i32 : i32, i32
  }
}

</mosaic_0001>

<llo_original>
// kernel: forward.1
$region0: #{forward.1}
  #allocation0 [shape = 'u32[]', space=smem, size = 0x4, offset = 0x4, fixed_abs, tag = 'smem constant byte address 0x4 - core index']
  #allocation1 [shape = 'u32[144,128]{1,0:T(1,128)}', space=vmem, size = 0x12000, scoped, tag = 'internal scratch']
  %s0 = inlined_call_operand.vmem [shape: f32[2,48], index: 0, kind: input, shape index: {}]
  %s1 = inlined_call_operand.hbm [shape: f32[48,256], index: 1, kind: input, shape index: {}]
  %s2 = inlined_call_operand.vmem [shape: f32[1,256], index: 2, kind: input, shape index: {}]
  %s3 = inlined_call_operand.vmem [shape: f32[2,256], index: 3, kind: output, shape index: {}]
  %s4 = sld [smem:[#allocation0]]
  $region26: #{forward.1} parent=0
    _
  %s6 = ssub.s32 1, %s4
  %s7 = scalar_select 0, %s6, %s4
  $region1: #{forward.1} parent=0
    #allocation2 [shape = 'u8[49152]{0}', space=vmem, size = 0xc000, scoped, tag = 'input window, operand 1, single buffered']
    #allocation3 [shape = 's32[1]{0}', space=sflag, size = 0x4, scoped, tag = 'scoped memory for forward.1']
    %8 = vsyncpa [#allocation3], 0
    // Predicated region
    $region2: #{forward.1} parent=1 // pred_check
      _
    $region3: #{forward.1} parent=1 // pred_check_branch
      %10 = sbr.rel (0) target = $region5
    $region4: #{forward.1} parent=1 // pred_region
      _
    $region5: #{forward.1} parent=1 // pred_fallthru
      _
    // Predicated region
    $region6: #{forward.1} parent=1 // pred_check
      _
    $region7: #{forward.1} parent=1 // pred_check_branch
      %12 = sbr.rel (0) target = $region9
    $region8: #{forward.1} parent=1 // pred_region
      %s14 = ssub.s32 1536, 1536
      %15 = vsyncadd [#allocation3], %s14
      %s16 = sshll.u32 [#allocation2], 4
      %s17 = int_to_ptr.vmem [resolvable:$true] %s16
      %22 = dma.hbm_to_vmem [thread:$0]  %s1, 1536, %s17, [#allocation3], 256, 256, 16
    $region9: #{forward.1} parent=1 // pred_fallthru
      _
    // Predicated region
    $region10: #{forward.1} parent=1 // pred_check
      _
    $region11: #{forward.1} parent=1 // pred_check_branch
      %24 = sbr.rel (0) target = $region13
    $region12: #{forward.1} parent=1 // pred_region
      _
    $region13: #{forward.1} parent=1 // pred_fallthru
      _
    // Predicated region
    $region14: #{forward.1} parent=1 // pred_check
      _
    $region15: #{forward.1} parent=1 // pred_check_branch
      %26 = sbr.rel (0) target = $region17
    $region16: #{forward.1} parent=1 // pred_region
      %27 = dma.done [#allocation3], 1536
    $region17: #{forward.1} parent=1 // pred_fallthru
      _
    %v28 = vld [vmem:[%s0] sm:$0x3]
    %v29 = vld [vmem:[#allocation2] sm:$0xff]
    %v30 = vld [vmem:[#allocation2 + $0x8] sm:$0xff]
    %v31 = vld [vmem:[#allocation2 + $0x10] sm:$0xff]
    %v32 = vld [vmem:[#allocation2 + $0x18] sm:$0xff]
    %v33 = vld [vmem:[#allocation2 + $0x20] sm:$0xff]
    %v34 = vld [vmem:[#allocation2 + $0x28] sm:$0xff]
    %v35 = vld [vmem:[#allocation2 + $0x30] sm:$0xff]
    %v36 = vld [vmem:[#allocation2 + $0x38] sm:$0xff]
    %v37 = vld [vmem:[#allocation2 + $0x40] sm:$0xff]
    %v38 = vld [vmem:[#allocation2 + $0x48] sm:$0xff]
    %v39 = vld [vmem:[#allocation2 + $0x50] sm:$0xff]
    %v40 = vld [vmem:[#allocation2 + $0x58] sm:$0xff]
    %v41 = vld [vmem:[%s2] sm:$0x3]
    %v43 = vlaneseq
    %v44 = vshrl.u32 %v43, 7
    %v45 = vsub.s32 0, %v44
    %v46 = vrot.slane %v41, %v45
    %v47 = vlaneseq
    %v48 = vshrl.u32 %v47, 7
    %v49 = vsub.s32 1, %v48
    %v50 = vrot.slane %v41, %v49
    %vm53 = vcmask 392192
    %v55 = vsel %vm53, %v28, 0
    %57 = vmatprep.subr.mxu0 %v30
    %58 = vmatpush1.msra.mxu0 %v29
    %59 = vmatprep.subr.mxu0 %v32
    %60 = vmatpush1.msra.mxu0 %v31
    %61 = vmatprep.subr.mxu0 %v34
    %62 = vmatpush1.msra.mxu0 %v33
    %63 = vmatprep.subr.mxu0 %v36
    %64 = vmatpush1.msra.mxu0 %v35
    %65 = vmatprep.subr.mxu0 %v38
    %66 = vmatpush1.msra.mxu0 %v37
    %67 = vmatprep.subr.mxu0 %v40
    %68 = vmatpush1.msra.mxu0 %v39
    %69 = vmatprep.subr.mxu0 0.0
    %70 = vmatpush1.msra.mxu0 0.0
    %71 = vmatprep.subr.mxu0 0.0
    %72 = vmatpush1.msra.mxu0 0.0
    %73 = vmatprep.subr.mxu0 0.0
    %74 = vmatpush1.msra.mxu0 0.0
    %75 = vmatprep.subr.mxu0 0.0
    %76 = vmatpush1.msra.mxu0 0.0
    %77 = vmatprep.subr.mxu0 0.0
    %78 = vmatpush1.msra.mxu0 0.0
    %79 = vmatprep.subr.mxu0 0.0
    %80 = vmatpush1.msra.mxu0 0.0
    %81 = vmatprep.subr.mxu0 0.0
    %82 = vmatpush1.msra.mxu0 0.0
    %83 = vmatprep.subr.mxu0 0.0
    %84 = vmatpush1.msra.mxu0 0.0
    %85 = vmatprep.subr.mxu0 0.0
    %86 = vmatpush1.msra.mxu0 0.0
    %87 = vmatprep.subr.mxu0 0.0
    %88 = vmatpush1.msra.mxu0 0.0
    %89 = vmatprep.subr.mxu0 0.0
    %90 = vmatpush1.msra.mxu0 0.0
    %91 = vmatprep.subr.mxu0 0.0
    %92 = vmatpush1.msra.mxu0 0.0
    %93 = vmatprep.subr.mxu0 0.0
    %94 = vmatpush1.msra.mxu0 0.0
    %95 = vmatprep.subr.mxu0 0.0
    %96 = vmatpush1.msra.mxu0 0.0
    %97 = vmatprep.subr.mxu0 0.0
    %98 = vmatpush1.msra.mxu0 0.0
    %99 = vmatprep.subr.mxu0 0.0
    %100 = vmatpush1.msra.mxu0 0.0
    %101 = vmatprep.subr.mxu0 0.0
    %102 = vmatpush1.msra.mxu0 0.0
    %103 = vmatprep.subr.mxu0 0.0
    %104 = vmatpush1.msra.mxu0 0.0
    %105 = vmatprep.subr.mxu0 0.0
    %106 = vmatpush1.msra.mxu0 0.0
    %107 = vmatprep.subr.mxu0 0.0
    %108 = vmatpush1.msra.mxu0 0.0
    %109 = vmatprep.subr.mxu0 0.0
    %110 = vmatpush1.msra.mxu0 0.0
    %111 = vmatprep.subr.mxu0 0.0
    %112 = vmatpush1.msra.mxu0 0.0
    %113 = vmatprep.subr.mxu0 0.0
    %114 = vmatpush1.msra.mxu0 0.0
    %115 = vmatprep.subr.mxu0 0.0
    %116 = vmatpush1.msra.mxu0 0.0
    %117 = vmatprep.subr.mxu0 0.0
    %118 = vmatpush1.msra.mxu0 0.0
    %119 = vmatprep.subr.mxu0 0.0
    %120 = vmatpush1.msra.mxu0 0.0
    %121 = vmatprep.mubr.f32.mxu0 0.0
    %122 = vmatmul.mubr.f32.gmra.mrb[0].mxu0 %v55
    %v123 = vpop.f32.mrb[0].mxu0
    %v124 = vadd.f32 %v46, %v123
    %v125 = vpop.f32.mrb[0].mxu0
    %v126 = vadd.f32 %v50, %v125
    %127 = vdwg.mxu0
    %v128 = vmax.f32 %v124, 0.0
    %v129 = vmax.f32 %v126, 0.0
    %v132 = vcombine.low %v128, %v129
    %v134 = vunpack.c.l.s4 1983009808
    %v135 = vunpack.c.0.s8 %v134
    %v136 = vlaneseq
    %v137 = vshrl.u32 %v136, 7
    %v138 = vsub.s32 %v135, %v137
    %v139 = vrot.slane %v132, %v138
    %141 = vst [vmem:[%s3] sm:$0xf] %v139
    // Predicated region
    $region18: #{forward.1} parent=1 // pred_check
      _
    $region19: #{forward.1} parent=1 // pred_check_branch
      %143 = sbr.rel (0) target = $region21
    $region20: #{forward.1} parent=1 // pred_region
      _
    $region21: #{forward.1} parent=1 // pred_fallthru
      _
    // Predicated region
    $region22: #{forward.1} parent=1 // pred_check
      _
    $region23: #{forward.1} parent=1 // pred_check_branch
      %145 = sbr.rel (0) target = $region25
    $region24: #{forward.1} parent=1 // pred_region
      _
    $region25: #{forward.1} parent=1 // pred_fallthru
      _
    %146 = vsyncpa [#allocation3], 1

</llo_original>
